<compile_context>
chip_gen: v7x
topology: tpu7x:2x2x1
jax: 0.10.0
libtpu: 0.0.40
codegen_flags: <defaults>
</compile_context>

<pallas_src>
import functools

import jax
import jax.numpy as jnp
from jax.experimental import pallas as pl
from jax.experimental.pallas import tpu as pltpu

_HIDDEN = 256
_LANE = 128
_SUBLANE = 16          # use 16 so bf16 output tiles are natively packed
_MAX_TB = 2048         # max batch tile; ~10 MiB VMEM footprint at this size


def _round_up(x, m):
    return ((x + m - 1) // m) * m


def _actor_kernel(x_ref, w1_ref, b1_ref, w2_ref, b2_ref, w3_ref, b3_ref,
                  out_ref, *, max_action):
    # Layer 1: (TB, S) @ (S, 256) -> (TB, 256), ReLU   (bf16 MXU, f32 acc)
    x = x_ref[...].astype(jnp.bfloat16)
    a = jnp.dot(x, w1_ref[...], preferred_element_type=jnp.float32)
    a = jnp.maximum(a + b1_ref[...], 0.0)
    # Layer 2: (TB, 256) @ (256, 256) -> (TB, 256), ReLU
    a = jnp.dot(a.astype(jnp.bfloat16), w2_ref[...],
                preferred_element_type=jnp.float32)
    a = jnp.maximum(a + b2_ref[...], 0.0)
    # Layer 3: (TB, 256) @ (256, A_pad) -> (TB, A_pad), tanh, scale (f32 epi)
    a = jnp.dot(a.astype(jnp.bfloat16), w3_ref[...],
                preferred_element_type=jnp.float32)
    out_ref[...] = (max_action * jnp.tanh(a + b3_ref[...])).astype(out_ref.dtype)


def prepare_actor_params(params):
    """One-time (per parameter update) prep: bf16 weights, lane-padded W3/b3.

    Returns (prepped_params, action_dim). Zero-padded W3/b3 columns stay zero
    through bias(0)+tanh and are sliced off in actor_forward, so this is exact.
    """
    w1, b1, w2, b2, w3, b3 = params
    action_dim = w3.shape[1]
    a_pad = _round_up(action_dim, _LANE)

    w1p = w1.astype(jnp.bfloat16)                     # (S, 256)
    w2p = w2.astype(jnp.bfloat16)                     # (256, 256)
    w3p = jnp.pad(w3, ((0, 0), (0, a_pad - action_dim))).astype(jnp.bfloat16)
    b1p = b1.reshape(1, -1).astype(jnp.float32)
    b2p = b2.reshape(1, -1).astype(jnp.float32)
    b3p = jnp.pad(b3.reshape(1, -1),
                  ((0, 0), (0, a_pad - action_dim))).astype(jnp.float32)
    return (w1p, b1p, w2p, b2p, w3p, b3p), action_dim


@functools.partial(jax.jit, static_argnames=("max_action", "action_dim"))
def _actor_forward_jit(state, w1p, b1p, w2p, b2p, w3p, b3p, *,
                       max_action, action_dim):
    B, state_dim = state.shape
    hidden = w1p.shape[1]
    a_pad = w3p.shape[1]

    # Batch tile: large enough to amortize per-step overhead, but capped at
    # ~half the (rounded) batch so v7x megacore gets >= 2 grid steps.
    b_ceil = _round_up(max(B, _SUBLANE), _SUBLANE)
    tb = min(_MAX_TB, max(_SUBLANE, _round_up(pl.cdiv(b_ceil, 2), _SUBLANE)))
    n_tiles = pl.cdiv(B, tb)

    # Honest VMEM budget (double-buffered streamed tiles + resident weights +
    # generous allowance for f32 activation temporaries), with 2x margin.
    est = (2 * tb * state_dim * state.dtype.itemsize          # state tiles
           + 2 * tb * a_pad * 2                               # bf16 out tiles
           + 2 * 2 * (state_dim * hidden + hidden * hidden + hidden * a_pad)
           + 2 * 4 * (2 * hidden + a_pad)                     # f32 biases
           + 4 * tb * hidden * 4)                             # activations
    vmem_limit = int(min(48 * 1024 * 1024, max(16 * 1024 * 1024, 2 * est)))

    kernel = functools.partial(_actor_kernel, max_action=float(max_action))

    resident = lambda i: (0, 0)  # weights/biases: same block every grid step
    out_padded = pl.pallas_call(
        kernel,
        out_shape=jax.ShapeDtypeStruct((B, a_pad), jnp.bfloat16),
        grid=(n_tiles,),
        in_specs=[
            pl.BlockSpec((tb, state_dim), lambda i: (i, 0)),   # state tile
            pl.BlockSpec((state_dim, hidden), resident),       # W1
            pl.BlockSpec((1, hidden), resident),               # b1
            pl.BlockSpec((hidden, hidden), resident),          # W2
            pl.BlockSpec((1, hidden), resident),               # b2
            pl.BlockSpec((hidden, a_pad), resident),           # W3
            pl.BlockSpec((1, a_pad), resident),                # b3
        ],
        out_specs=pl.BlockSpec((tb, a_pad), lambda i: (i, 0)),
        compiler_params=pltpu.CompilerParams(
            dimension_semantics=("parallel",),
            vmem_limit_bytes=vmem_limit,
        ),
    )(state, w1p, b1p, w2p, b2p, w3p, b3p)

    return out_padded[:B, :action_dim].astype(jnp.float32)


def actor_forward(state, prepped_params, max_action, action_dim):
    """state: (B, state_dim) -> (B, action_dim) float32."""
    return _actor_forward_jit(state, *prepped_params,
                              max_action=float(max_action),
                              action_dim=int(action_dim))


def init_actor_params(key, state_dim, action_dim, hidden=_HIDDEN):
    """Deterministic init matching PyTorch nn.Linear shapes.

    Weights kept as (in_features, out_features); biases as (1, out_features).
    U(-1/sqrt(fan_in), 1/sqrt(fan_in)) like torch.nn.Linear defaults.
    """
    keys = jax.random.split(key, 6)

    def lin(kw, kb, fan_in, fan_out):
        bound = 1.0 / jnp.sqrt(jnp.float32(fan_in))
        w = jax.random.uniform(kw, (fan_in, fan_out), jnp.float32, -bound, bound)
        b = jax.random.uniform(kb, (1, fan_out), jnp.float32, -bound, bound)
        return w, b

    w1, b1 = lin(keys[0], keys[1], state_dim, hidden)
    w2, b2 = lin(keys[2], keys[3], hidden, hidden)
    w3, b3 = lin(keys[4], keys[5], hidden, action_dim)
    return (w1, b1, w2, b2, w3, b3)


def actor_reference(state, params, max_action):
    """Pure-JAX f32 reference for correctness check."""
    w1, b1, w2, b2, w3, b3 = params
    a = jnp.maximum(state @ w1 + b1, 0.0)
    a = jnp.maximum(a @ w2 + b2, 0.0)
    return max_action * jnp.tanh(a @ w3 + b3)


if __name__ == "__main__":
    key = jax.random.PRNGKey(0)
    k_params, k_state = jax.random.split(key)

    batch = 2
    state_dim = 32
    action_dim = 8
    max_action = 2.0

    params = init_actor_params(k_params, state_dim, action_dim)
    prepped, a_dim = prepare_actor_params(params)
    state = jax.random.normal(k_state, (batch, state_dim), jnp.float32)

    out = actor_forward(state, prepped, max_action, a_dim)
    out = jax.block_until_ready(out)

    ref = actor_reference(state, params, max_action)
    assert out.shape == (batch, action_dim)
    # bf16 MXU inputs / bf16 output tile with f32 accumulation & epilogue:
    # relaxed (but tight) tolerance.
    assert jnp.allclose(out, ref, atol=2e-2, rtol=2e-2), "mismatch vs reference"

    print("KERNEL_OK")
</pallas_src>

<mosaic_0001>
module attributes {stable_mosaic.version = 11 : i64} {
  func.func @_actor_kernel(%arg0: i32, %arg1: memref<16x32xf32, #tpu.memory_space<vmem>>, %arg2: memref<32x256xbf16, #tpu.memory_space<vmem>>, %arg3: memref<1x256xf32, #tpu.memory_space<vmem>>, %arg4: memref<256x256xbf16, #tpu.memory_space<vmem>>, %arg5: memref<1x256xf32, #tpu.memory_space<vmem>>, %arg6: memref<256x128xbf16, #tpu.memory_space<vmem>>, %arg7: memref<1x128xf32, #tpu.memory_space<vmem>>, %arg8: memref<16x128xbf16, #tpu.memory_space<vmem>>) attributes {dimension_semantics = [#tpu.dimension_semantics<parallel>], iteration_bounds = array<i64: 1>, scalar_prefetch = 0 : i64, scratch_operands = 0 : i64, tpu.core_type = #tpu.core_type<tc>, window_params = [{transform_indices = @transform_0, window_bounds = array<i64: 16, 32>}, {pipeline_mode = #tpu.pipeline_mode<synchronous>, transform_indices = @transform_1, window_bounds = array<i64: 32, 256>}, {pipeline_mode = #tpu.pipeline_mode<synchronous>, transform_indices = @transform_2, window_bounds = array<i64: 1, 256>}, {pipeline_mode = #tpu.pipeline_mode<synchronous>, transform_indices = @transform_3, window_bounds = array<i64: 256, 256>}, {pipeline_mode = #tpu.pipeline_mode<synchronous>, transform_indices = @transform_4, window_bounds = array<i64: 1, 256>}, {pipeline_mode = #tpu.pipeline_mode<synchronous>, transform_indices = @transform_5, window_bounds = array<i64: 256, 128>}, {pipeline_mode = #tpu.pipeline_mode<synchronous>, transform_indices = @transform_6, window_bounds = array<i64: 1, 128>}, {transform_indices = @transform_7, window_bounds = array<i64: 16, 128>}]} {
    %c0 = arith.constant 0 : index
    %c0_0 = arith.constant 0 : index
    %0 = vector.load %arg1[%c0, %c0_0] : memref<16x32xf32, #tpu.memory_space<vmem>>, vector<16x32xf32>
    %1 = arith.truncf %0 : vector<16x32xf32> to vector<16x32xbf16>
    %c0_1 = arith.constant 0 : index
    %c0_2 = arith.constant 0 : index
    %2 = vector.load %arg2[%c0_1, %c0_2] : memref<32x256xbf16, #tpu.memory_space<vmem>>, vector<32x256xbf16>
    %cst = arith.constant dense<0.000000e+00> : vector<16x256xf32>
    %3 = tpu.matmul %1, %2, %cst {dimension_numbers = #tpu.dot_dimension_numbers<[1], [0], [0], [1], [0, 0, 1, 1], [], []>} : vector<16x32xbf16>, vector<32x256xbf16>, vector<16x256xf32> -> vector<16x256xf32>
    %c0_3 = arith.constant 0 : index
    %c0_4 = arith.constant 0 : index
    %4 = vector.load %arg3[%c0_3, %c0_4] : memref<1x256xf32, #tpu.memory_space<vmem>>, vector<1x256xf32>
    %5 = vector.broadcast %4 : vector<1x256xf32> to vector<16x256xf32>
    %6 = arith.addf %3, %5 : vector<16x256xf32>
    %cst_5 = arith.constant 0.000000e+00 : f32
    %7 = vector.broadcast %cst_5 : f32 to vector<16x256xf32>
    %8 = arith.maximumf %6, %7 : vector<16x256xf32>
    %9 = arith.truncf %8 : vector<16x256xf32> to vector<16x256xbf16>
    %c0_6 = arith.constant 0 : index
    %c0_7 = arith.constant 0 : index
    %10 = vector.load %arg4[%c0_6, %c0_7] : memref<256x256xbf16, #tpu.memory_space<vmem>>, vector<256x256xbf16>
    %cst_8 = arith.constant dense<0.000000e+00> : vector<16x256xf32>
    %11 = tpu.matmul %9, %10, %cst_8 {dimension_numbers = #tpu.dot_dimension_numbers<[1], [0], [0], [1], [0, 0, 1, 1], [], []>} : vector<16x256xbf16>, vector<256x256xbf16>, vector<16x256xf32> -> vector<16x256xf32>
    %c0_9 = arith.constant 0 : index
    %c0_10 = arith.constant 0 : index
    %12 = vector.load %arg5[%c0_9, %c0_10] : memref<1x256xf32, #tpu.memory_space<vmem>>, vector<1x256xf32>
    %13 = vector.broadcast %12 : vector<1x256xf32> to vector<16x256xf32>
    %14 = arith.addf %11, %13 : vector<16x256xf32>
    %cst_11 = arith.constant 0.000000e+00 : f32
    %15 = vector.broadcast %cst_11 : f32 to vector<16x256xf32>
    %16 = arith.maximumf %14, %15 : vector<16x256xf32>
    %17 = arith.truncf %16 : vector<16x256xf32> to vector<16x256xbf16>
    %c0_12 = arith.constant 0 : index
    %c0_13 = arith.constant 0 : index
    %18 = vector.load %arg6[%c0_12, %c0_13] : memref<256x128xbf16, #tpu.memory_space<vmem>>, vector<256x128xbf16>
    %cst_14 = arith.constant dense<0.000000e+00> : vector<16x128xf32>
    %19 = tpu.matmul %17, %18, %cst_14 {dimension_numbers = #tpu.dot_dimension_numbers<[1], [0], [0], [1], [0, 0, 1, 1], [], []>} : vector<16x256xbf16>, vector<256x128xbf16>, vector<16x128xf32> -> vector<16x128xf32>
    %c0_15 = arith.constant 0 : index
    %c0_16 = arith.constant 0 : index
    %20 = vector.load %arg7[%c0_15, %c0_16] : memref<1x128xf32, #tpu.memory_space<vmem>>, vector<1x128xf32>
    %21 = vector.broadcast %20 : vector<1x128xf32> to vector<16x128xf32>
    %22 = arith.addf %19, %21 : vector<16x128xf32>
    %23 = math.tanh %22 : vector<16x128xf32>
    %cst_17 = arith.constant 2.000000e+00 : f32
    %24 = vector.broadcast %cst_17 : f32 to vector<16x128xf32>
    %25 = arith.mulf %24, %23 : vector<16x128xf32>
    %26 = arith.truncf %25 : vector<16x128xf32> to vector<16x128xbf16>
    %c0_18 = arith.constant 0 : index
    %c0_19 = arith.constant 0 : index
    %27 = vector.load %arg8[%c0_18, %c0_19] : memref<16x128xbf16, #tpu.memory_space<vmem>>, vector<16x128xbf16>
    tpu.vector_store %arg8[%c0_18, %c0_19], %26 {strides = array<i32>} : memref<16x128xbf16, #tpu.memory_space<vmem>>, vector<16x128xbf16>,
    return
  }
  func.func @transform_0(%arg0: i32) -> (i32, i32) {
    %c0_i32 = arith.constant 0 : i32
    %c0_i32_0 = arith.constant 0 : i32
    return %arg0, %c0_i32 : i32, i32
  }
  func.func @transform_1(%arg0: i32) -> (i32, i32) {
    %c0_i32 = arith.constant 0 : i32
    %c0_i32_0 = arith.constant 0 : i32
    %c0_i32_1 = arith.constant 0 : i32
    return %c0_i32, %c0_i32_0 : i32, i32
  }
  func.func @transform_2(%arg0: i32) -> (i32, i32) {
    %c0_i32 = arith.constant 0 : i32
    %c0_i32_0 = arith.constant 0 : i32
    %c0_i32_1 = arith.constant 0 : i32
    return %c0_i32, %c0_i32_0 : i32, i32
  }
  func.func @transform_3(%arg0: i32) -> (i32, i32) {
    %c0_i32 = arith.constant 0 : i32
    %c0_i32_0 = arith.constant 0 : i32
    %c0_i32_1 = arith.constant 0 : i32
    return %c0_i32, %c0_i32_0 : i32, i32
  }
  func.func @transform_4(%arg0: i32) -> (i32, i32) {
    %c0_i32 = arith.constant 0 : i32
    %c0_i32_0 = arith.constant 0 : i32
    %c0_i32_1 = arith.constant 0 : i32
    return %c0_i32, %c0_i32_0 : i32, i32
  }
  func.func @transform_5(%arg0: i32) -> (i32, i32) {
    %c0_i32 = arith.constant 0 : i32
    %c0_i32_0 = arith.constant 0 : i32
    %c0_i32_1 = arith.constant 0 : i32
    return %c0_i32, %c0_i32_0 : i32, i32
  }
  func.func @transform_6(%arg0: i32) -> (i32, i32) {
    %c0_i32 = arith.constant 0 : i32
    %c0_i32_0 = arith.constant 0 : i32
    %c0_i32_1 = arith.constant 0 : i32
    return %c0_i32, %c0_i32_0 : i32, i32
  }
  func.func @transform_7(%arg0: i32) -> (i32, i32) {
    %c0_i32 = arith.constant 0 : i32
    %c0_i32_0 = arith.constant 0 : i32
    return %arg0, %c0_i32 : i32, i32
  }
}

</mosaic_0001>

<llo_original>
// kernel: _actor_forward_jit.1
$region0: #{_actor_forward_jit.1}
  #allocation0 [shape = 'u32[]', space=smem, size = 0x4, offset = 0x4, fixed_abs, tag = 'smem constant byte address 0x4 - core index']
  #allocation1 [shape = 'u32[144,128]{1,0:T(1,128)}', space=vmem, size = 0x12000, scoped, tag = 'internal scratch']
  %s0 = inlined_call_operand.hbm [shape: f32[2,32], index: 0, kind: input, shape index: {}]
  %s1 = inlined_call_operand.hbm [shape: bf16[32,256], index: 1, kind: input, shape index: {}]
  %s2 = inlined_call_operand.vmem [shape: f32[1,256], index: 2, kind: input, shape index: {}]
  %s3 = inlined_call_operand.hbm [shape: bf16[256,256], index: 3, kind: input, shape index: {}]
  %s4 = inlined_call_operand.vmem [shape: f32[1,256], index: 4, kind: input, shape index: {}]
  %s5 = inlined_call_operand.hbm [shape: bf16[256,128], index: 5, kind: input, shape index: {}]
  %s6 = inlined_call_operand.vmem [shape: f32[1,128], index: 6, kind: input, shape index: {}]
  %s7 = inlined_call_operand.vmem [shape: bf16[2,128], index: 7, kind: output, shape index: {}]
  %s8 = sld [smem:[#allocation0]]
  $region84: #{_actor_forward_jit.1} parent=0
    _
  %s10 = ssub.s32 1, %s8
  %s11 = scalar_select 0, %s10, %s8
  $region1: #{_actor_forward_jit.1} parent=0
    #allocation2 [shape = 'u8[8192]{0}', space=vmem, size = 0x2000, scoped, tag = 'input window, operand 0, single buffered']
    #allocation3 [shape = 's32[1]{0}', space=sflag, size = 0x4, scoped, tag = 'scoped memory for _actor_forward_jit.1']
    #allocation4 [shape = 'u8[16384]{0}', space=vmem, size = 0x4000, scoped, tag = 'input window, operand 1, single buffered']
    #allocation5 [shape = 's32[1]{0}', space=sflag, size = 0x4, scoped, tag = 'scoped memory for _actor_forward_jit.1']
    #allocation6 [shape = 'u8[131072]{0}', space=vmem, size = 0x20000, scoped, tag = 'input window, operand 3, single buffered']
    #allocation7 [shape = 'u8[65536]{0}', space=vmem, size = 0x10000, scoped, tag = 'input window, operand 5, single buffered']
    #allocation8 [shape = 's32[1]{0}', space=sflag, size = 0x4, scoped, tag = 'scoped memory for _actor_forward_jit.1']
    #allocation9 [shape = 'u8[4096]{0}', space=vmem, size = 0x1000, scoped, tag = 'output window, operand 0, single buffered']
    %12 = vsyncpa [#allocation3], 0
    %13 = vsyncpa [#allocation5], 0
    %14 = vsyncpa [#allocation8], 0
    // Predicated region
    $region2: #{_actor_forward_jit.1} parent=1 // pred_check
      _
    $region3: #{_actor_forward_jit.1} parent=1 // pred_check_branch
      %16 = sbr.rel (0) target = $region5
    $region4: #{_actor_forward_jit.1} parent=1 // pred_region
      %s18 = ssub.s32 256, 32
      %19 = vsyncadd [#allocation3], %s18
      %s20 = sshll.u32 [#allocation2], 4
      %s21 = int_to_ptr.vmem [resolvable:$true] %s20
      %26 = dma.hbm_to_vmem [thread:$0]  %s0, 32, %s21, [#allocation3], 32, 32, 2
    $region5: #{_actor_forward_jit.1} parent=1 // pred_fallthru
      _
    // Predicated region
    $region6: #{_actor_forward_jit.1} parent=1 // pred_check
      _
    $region7: #{_actor_forward_jit.1} parent=1 // pred_check_branch
      %28 = sbr.rel (0) target = $region9
    $region8: #{_actor_forward_jit.1} parent=1 // pred_region
      %s30 = ssub.s32 512, 512
      %31 = vsyncadd [#allocation5], %s30
      %s32 = sshll.u32 [#allocation4], 4
      %s33 = int_to_ptr.vmem [resolvable:$true] %s32
      %38 = dma.hbm_to_vmem [thread:$0]  %s1, 512, %s33, [#allocation5], 128, 128, 8
    $region9: #{_actor_forward_jit.1} parent=1 // pred_fallthru
      _
    // Predicated region
    $region10: #{_actor_forward_jit.1} parent=1 // pred_check
      _
    $region11: #{_actor_forward_jit.1} parent=1 // pred_check_branch
      %40 = sbr.rel (0) target = $region13
    $region12: #{_actor_forward_jit.1} parent=1 // pred_region
      _
    $region13: #{_actor_forward_jit.1} parent=1 // pred_fallthru
      _
    // Predicated region
    $region14: #{_actor_forward_jit.1} parent=1 // pred_check
      _
    $region15: #{_actor_forward_jit.1} parent=1 // pred_check_branch
      %42 = sbr.rel (0) target = $region17
    $region16: #{_actor_forward_jit.1} parent=1 // pred_region
      %s44 = ssub.s32 4096, 4096
      %45 = vsyncadd [#allocation5], %s44
      %s46 = sshll.u32 [#allocation6], 4
      %s47 = int_to_ptr.vmem [resolvable:$true] %s46
      %52 = dma.hbm_to_vmem [thread:$0]  %s3, 4096, %s47, [#allocation5], 128, 128, 8
    $region17: #{_actor_forward_jit.1} parent=1 // pred_fallthru
      _
    // Predicated region
    $region18: #{_actor_forward_jit.1} parent=1 // pred_check
      _
    $region19: #{_actor_forward_jit.1} parent=1 // pred_check_branch
      %54 = sbr.rel (0) target = $region21
    $region20: #{_actor_forward_jit.1} parent=1 // pred_region
      _
    $region21: #{_actor_forward_jit.1} parent=1 // pred_fallthru
      _
    // Predicated region
    $region22: #{_actor_forward_jit.1} parent=1 // pred_check
      _
    $region23: #{_actor_forward_jit.1} parent=1 // pred_check_branch
      %56 = sbr.rel (0) target = $region25
    $region24: #{_actor_forward_jit.1} parent=1 // pred_region
      %s58 = ssub.s32 2048, 2048
      %59 = vsyncadd [#allocation8], %s58
      %s60 = sshll.u32 [#allocation7], 4
      %s61 = int_to_ptr.vmem [resolvable:$true] %s60
      %66 = dma.hbm_to_vmem [thread:$0]  %s5, 2048, %s61, [#allocation8], 64, 64, 4
    $region25: #{_actor_forward_jit.1} parent=1 // pred_fallthru
      _
    // Predicated region
    $region26: #{_actor_forward_jit.1} parent=1 // pred_check
      _
    $region27: #{_actor_forward_jit.1} parent=1 // pred_check_branch
      %68 = sbr.rel (0) target = $region29
    $region28: #{_actor_forward_jit.1} parent=1 // pred_region
      _
    $region29: #{_actor_forward_jit.1} parent=1 // pred_fallthru
      _
    // Predicated region
    $region30: #{_actor_forward_jit.1} parent=1 // pred_check
      _
    $region31: #{_actor_forward_jit.1} parent=1 // pred_check_branch
      %70 = sbr.rel (0) target = $region33
    $region32: #{_actor_forward_jit.1} parent=1 // pred_region
      %71 = dma.done [#allocation3], 256
    $region33: #{_actor_forward_jit.1} parent=1 // pred_fallthru
      _
    // Predicated region
    $region34: #{_actor_forward_jit.1} parent=1 // pred_check
      _
    $region35: #{_actor_forward_jit.1} parent=1 // pred_check_branch
      %73 = sbr.rel (0) target = $region37
    $region36: #{_actor_forward_jit.1} parent=1 // pred_region
      %74 = dma.done [#allocation5], 512
    $region37: #{_actor_forward_jit.1} parent=1 // pred_fallthru
      _
    // Predicated region
    $region38: #{_actor_forward_jit.1} parent=1 // pred_check
      _
    $region39: #{_actor_forward_jit.1} parent=1 // pred_check_branch
      %76 = sbr.rel (0) target = $region41
    $region40: #{_actor_forward_jit.1} parent=1 // pred_region
      %77 = dma.done [#allocation5], 4096
    $region41: #{_actor_forward_jit.1} parent=1 // pred_fallthru
      _
    // Predicated region
    $region42: #{_actor_forward_jit.1} parent=1 // pred_check
      _
    $region43: #{_actor_forward_jit.1} parent=1 // pred_check_branch
      %79 = sbr.rel (0) target = $region45
    $region44: #{_actor_forward_jit.1} parent=1 // pred_region
      %80 = dma.done [#allocation8], 2048
    $region45: #{_actor_forward_jit.1} parent=1 // pred_fallthru
      _
    %v82 = vld [vmem:[#allocation2] sm:$0xff]
    %v83 = vld [vmem:[#allocation2 + $0x8] sm:$0xff]
    %v84 = vpack.c.bf16 %v83, %v82
    %v85 = vld [vmem:[#allocation4] sm:$0xff]
    %v86 = vld [vmem:[#allocation4 + $0x8] sm:$0xff]
    %v87 = vld [vmem:[#allocation4 + $0x10] sm:$0xff]
    %v88 = vld [vmem:[#allocation4 + $0x18] sm:$0xff]
    %v89 = vld [vmem:[%s2] sm:$0x3]
    %v91 = vlaneseq
    %v92 = vshrl.u32 %v91, 7
    %v93 = vsub.s32 0, %v92
    %v94 = vrot.slane %v89, %v93
    %v95 = vlaneseq
    %v96 = vshrl.u32 %v95, 7
    %v97 = vsub.s32 1, %v96
    %v98 = vrot.slane %v89, %v97
    %v105 = vunpack.c.l.b16 %v85
    %v106 = vunpack.c.h.b16 %v85
    %v107 = vunpack.c.l.b16 %v86
    %v108 = vunpack.c.h.b16 %v86
    %v109 = vunpack.c.l.b16 %v87
    %v110 = vunpack.c.h.b16 %v87
    %v111 = vunpack.c.l.b16 %v88
    %v112 = vunpack.c.h.b16 %v88
    %v113 = vpack.c.b16 %v107, %v105
    %v114 = vpack.c.b16 %v108, %v106
    %v115 = vpack.c.b16 %v111, %v109
    %v116 = vpack.c.b16 %v112, %v110
    %vm121 = vcmask 261120
    %v123 = vsel %vm121, %v84, 0
    %125 = vmatprep.subr.bf16.mxu0 %v114
    %126 = vmatpush1.bf16.msra.mxu0 %v113
    %127 = vmatprep.subr.bf16.mxu0 %v116
    %128 = vmatpush1.bf16.msra.mxu0 %v115
    %129 = vmatprep.subr.bf16.mxu0 0
    %130 = vmatpush1.bf16.msra.mxu0 0
    %131 = vmatprep.subr.bf16.mxu0 0
    %132 = vmatpush1.bf16.msra.mxu0 0
    %133 = vmatprep.subr.bf16.mxu0 0
    %134 = vmatpush1.bf16.msra.mxu0 0
    %135 = vmatprep.subr.bf16.mxu0 0
    %136 = vmatpush1.bf16.msra.mxu0 0
    %137 = vmatprep.subr.bf16.mxu0 0
    %138 = vmatpush1.bf16.msra.mxu0 0
    %139 = vmatprep.subr.bf16.mxu0 0
    %140 = vmatpush1.bf16.msra.mxu0 0
    %141 = vmatprep.subr.bf16.mxu0 0
    %142 = vmatpush1.bf16.msra.mxu0 0
    %143 = vmatprep.subr.bf16.mxu0 0
    %144 = vmatpush1.bf16.msra.mxu0 0
    %145 = vmatprep.subr.bf16.mxu0 0
    %146 = vmatpush1.bf16.msra.mxu0 0
    %147 = vmatprep.subr.bf16.mxu0 0
    %148 = vmatpush1.bf16.msra.mxu0 0
    %149 = vmatprep.subr.bf16.mxu0 0
    %150 = vmatpush1.bf16.msra.mxu0 0
    %151 = vmatprep.subr.bf16.mxu0 0
    %152 = vmatpush1.bf16.msra.mxu0 0
    %153 = vmatprep.subr.bf16.mxu0 0
    %154 = vmatpush1.bf16.msra.mxu0 0
    %155 = vmatprep.subr.bf16.mxu0 0
    %156 = vmatpush1.bf16.msra.mxu0 0
    %157 = vmatprep.mubr.bf16.mxu0 0
    %158 = vmatmul.mubr.bf16.gmra.mrb[0].mxu0 %v123
    %v159 = vpop.f32.mrb[0].mxu0
    %v160 = vadd.f32 %v94, %v159
    %v161 = vpop.f32.mrb[0].mxu0
    %v162 = vadd.f32 %v98, %v161
    %v163 = vpop.f32.mrb[0].mxu0
    %v164 = vadd.f32 %v94, %v163
    %v165 = vpop.f32.mrb[0].mxu0
    %v166 = vadd.f32 %v98, %v165
    %167 = vdwg.mxu0
    %v168 = vmax.f32 %v160, 0.0
    %v169 = vmax.f32 %v162, 0.0
    %v170 = vmax.f32 %v164, 0.0
    %v171 = vmax.f32 %v166, 0.0
    %v172 = vpack.c.bf16 %v170, %v168
    %v173 = vpack.c.bf16 %v171, %v169
    %v174 = vld [vmem:[#allocation6] sm:$0xff]
    %v175 = vld [vmem:[#allocation6 + $0x8] sm:$0xff]
    %v176 = vld [vmem:[#allocation6 + $0x10] sm:$0xff]
    %v177 = vld [vmem:[#allocation6 + $0x18] sm:$0xff]
    %v178 = vld [vmem:[#allocation6 + $0x20] sm:$0xff]
    %v179 = vld [vmem:[#allocation6 + $0x28] sm:$0xff]
    %v180 = vld [vmem:[#allocation6 + $0x30] sm:$0xff]
    %v181 = vld [vmem:[#allocation6 + $0x38] sm:$0xff]
    %v182 = vld [vmem:[#allocation6 + $0x40] sm:$0xff]
    %v183 = vld [vmem:[#allocation6 + $0x48] sm:$0xff]
    %v184 = vld [vmem:[#allocation6 + $0x50] sm:$0xff]
    %v185 = vld [vmem:[#allocation6 + $0x58] sm:$0xff]
    %v186 = vld [vmem:[#allocation6 + $0x60] sm:$0xff]
    %v187 = vld [vmem:[#allocation6 + $0x68] sm:$0xff]
    %v188 = vld [vmem:[#allocation6 + $0x70] sm:$0xff]
    %v189 = vld [vmem:[#allocation6 + $0x78] sm:$0xff]
    %v190 = vld [vmem:[#allocation6 + $0x80] sm:$0xff]
    %v191 = vld [vmem:[#allocation6 + $0x88] sm:$0xff]
    %v192 = vld [vmem:[#allocation6 + $0x90] sm:$0xff]
    %v193 = vld [vmem:[#allocation6 + $0x98] sm:$0xff]
    %v194 = vld [vmem:[#allocation6 + $0xa0] sm:$0xff]
    %v195 = vld [vmem:[#allocation6 + $0xa8] sm:$0xff]
    %v196 = vld [vmem:[#allocation6 + $0xb0] sm:$0xff]
    %v197 = vld [vmem:[#allocation6 + $0xb8] sm:$0xff]
    %v198 = vld [vmem:[#allocation6 + $0xc0] sm:$0xff]
    %v199 = vld [vmem:[#allocation6 + $0xc8] sm:$0xff]
    %v200 = vld [vmem:[#allocation6 + $0xd0] sm:$0xff]
    %v201 = vld [vmem:[#allocation6 + $0xd8] sm:$0xff]
    %v202 = vld [vmem:[#allocation6 + $0xe0] sm:$0xff]
    %v203 = vld [vmem:[#allocation6 + $0xe8] sm:$0xff]
    %v204 = vld [vmem:[#allocation6 + $0xf0] sm:$0xff]
    %v205 = vld [vmem:[#allocation6 + $0xf8] sm:$0xff]
    %v206 = vld [vmem:[%s4] sm:$0x3]
    %v208 = vlaneseq
    %v209 = vshrl.u32 %v208, 7
    %v210 = vsub.s32 0, %v209
    %v211 = vrot.slane %v206, %v210
    %v212 = vlaneseq
    %v213 = vshrl.u32 %v212, 7
    %v214 = vsub.s32 1, %v213
    %v215 = vrot.slane %v206, %v214
    %v250 = vunpack.c.l.b16 %v174
    %v251 = vunpack.c.h.b16 %v174
    %v252 = vunpack.c.l.b16 %v175
    %v253 = vunpack.c.h.b16 %v175
    %v254 = vunpack.c.l.b16 %v176
    %v255 = vunpack.c.h.b16 %v176
    %v256 = vunpack.c.l.b16 %v177
    %v257 = vunpack.c.h.b16 %v177
    %v258 = vunpack.c.l.b16 %v178
    %v259 = vunpack.c.h.b16 %v178
    %v260 = vunpack.c.l.b16 %v179
    %v261 = vunpack.c.h.b16 %v179
    %v262 = vunpack.c.l.b16 %v180
    %v263 = vunpack.c.h.b16 %v180
    %v264 = vunpack.c.l.b16 %v181
    %v265 = vunpack.c.h.b16 %v181
    %v266 = vunpack.c.l.b16 %v182
    %v267 = vunpack.c.h.b16 %v182
    %v268 = vunpack.c.l.b16 %v183
    %v269 = vunpack.c.h.b16 %v183
    %v270 = vunpack.c.l.b16 %v184
    %v271 = vunpack.c.h.b16 %v184
    %v272 = vunpack.c.l.b16 %v185
    %v273 = vunpack.c.h.b16 %v185
    %v274 = vunpack.c.l.b16 %v186
    %v275 = vunpack.c.h.b16 %v186
    %v276 = vunpack.c.l.b16 %v187
    %v277 = vunpack.c.h.b16 %v187
    %v278 = vunpack.c.l.b16 %v188
    %v279 = vunpack.c.h.b16 %v188
    %v280 = vunpack.c.l.b16 %v189
    %v281 = vunpack.c.h.b16 %v189
    %v282 = vunpack.c.l.b16 %v190
    %v283 = vunpack.c.h.b16 %v190
    %v284 = vunpack.c.l.b16 %v191
    %v285 = vunpack.c.h.b16 %v191
    %v286 = vunpack.c.l.b16 %v192
    %v287 = vunpack.c.h.b16 %v192
    %v288 = vunpack.c.l.b16 %v193
    %v289 = vunpack.c.h.b16 %v193
    %v290 = vunpack.c.l.b16 %v194
    %v291 = vunpack.c.h.b16 %v194
    %v292 = vunpack.c.l.b16 %v195
    %v293 = vunpack.c.h.b16 %v195
    %v294 = vunpack.c.l.b16 %v196
    %v295 = vunpack.c.h.b16 %v196
    %v296 = vunpack.c.l.b16 %v197
    %v297 = vunpack.c.h.b16 %v197
    %v298 = vunpack.c.l.b16 %v198
    %v299 = vunpack.c.h.b16 %v198
    %v300 = vunpack.c.l.b16 %v199
    %v301 = vunpack.c.h.b16 %v199
    %v302 = vunpack.c.l.b16 %v200
    %v303 = vunpack.c.h.b16 %v200
    %v304 = vunpack.c.l.b16 %v201
    %v305 = vunpack.c.h.b16 %v201
    %v306 = vunpack.c.l.b16 %v202
    %v307 = vunpack.c.h.b16 %v202
    %v308 = vunpack.c.l.b16 %v203
    %v309 = vunpack.c.h.b16 %v203
    %v310 = vunpack.c.l.b16 %v204
    %v311 = vunpack.c.h.b16 %v204
    %v312 = vunpack.c.l.b16 %v205
    %v313 = vunpack.c.h.b16 %v205
    %v314 = vpack.c.b16 %v252, %v250
    %v315 = vpack.c.b16 %v253, %v251
    %v316 = vpack.c.b16 %v256, %v254
    %v317 = vpack.c.b16 %v257, %v255
    %v318 = vpack.c.b16 %v260, %v258
    %v319 = vpack.c.b16 %v261, %v259
    %v320 = vpack.c.b16 %v264, %v262
    %v321 = vpack.c.b16 %v265, %v263
    %v322 = vpack.c.b16 %v268, %v266
    %v323 = vpack.c.b16 %v269, %v267
    %v324 = vpack.c.b16 %v272, %v270
    %v325 = vpack.c.b16 %v273, %v271
    %v326 = vpack.c.b16 %v276, %v274
    %v327 = vpack.c.b16 %v277, %v275
    %v328 = vpack.c.b16 %v280, %v278
    %v329 = vpack.c.b16 %v281, %v279
    %v330 = vpack.c.b16 %v284, %v282
    %v331 = vpack.c.b16 %v285, %v283
    %v332 = vpack.c.b16 %v288, %v286
    %v333 = vpack.c.b16 %v289, %v287
    %v334 = vpack.c.b16 %v292, %v290
    %v335 = vpack.c.b16 %v293, %v291
    %v336 = vpack.c.b16 %v296, %v294
    %v337 = vpack.c.b16 %v297, %v295
    %v338 = vpack.c.b16 %v300, %v298
    %v339 = vpack.c.b16 %v301, %v299
    %v340 = vpack.c.b16 %v304, %v302
    %v341 = vpack.c.b16 %v305, %v303
    %v342 = vpack.c.b16 %v308, %v306
    %v343 = vpack.c.b16 %v309, %v307
    %v344 = vpack.c.b16 %v312, %v310
    %v345 = vpack.c.b16 %v313, %v311
    %378 = vmatprep.subr.bf16.mxu0 %v315
    %379 = vmatpush1.bf16.msra.mxu0 %v314
    %380 = vmatprep.subr.bf16.mxu0 %v317
    %381 = vmatpush1.bf16.msra.mxu0 %v316
    %382 = vmatprep.subr.bf16.mxu0 %v319
    %383 = vmatpush1.bf16.msra.mxu0 %v318
    %384 = vmatprep.subr.bf16.mxu0 %v321
    %385 = vmatpush1.bf16.msra.mxu0 %v320
    %386 = vmatprep.subr.bf16.mxu0 %v323
    %387 = vmatpush1.bf16.msra.mxu0 %v322
    %388 = vmatprep.subr.bf16.mxu0 %v325
    %389 = vmatpush1.bf16.msra.mxu0 %v324
    %390 = vmatprep.subr.bf16.mxu0 %v327
    %391 = vmatpush1.bf16.msra.mxu0 %v326
    %392 = vmatprep.subr.bf16.mxu0 %v329
    %393 = vmatpush1.bf16.msra.mxu0 %v328
    %394 = vmatprep.subr.bf16.mxu0 %v331
    %395 = vmatpush1.bf16.msra.mxu0 %v330
    %396 = vmatprep.subr.bf16.mxu0 %v333
    %397 = vmatpush1.bf16.msra.mxu0 %v332
    %398 = vmatprep.subr.bf16.mxu0 %v335
    %399 = vmatpush1.bf16.msra.mxu0 %v334
    %400 = vmatprep.subr.bf16.mxu0 %v337
    %401 = vmatpush1.bf16.msra.mxu0 %v336
    %402 = vmatprep.subr.bf16.mxu0 %v339
    %403 = vmatpush1.bf16.msra.mxu0 %v338
    %404 = vmatprep.subr.bf16.mxu0 %v341
    %405 = vmatpush1.bf16.msra.mxu0 %v340
    %406 = vmatprep.subr.bf16.mxu0 %v343
    %407 = vmatpush1.bf16.msra.mxu0 %v342
    %408 = vmatprep.subr.bf16.mxu0 %v345
    %409 = vmatpush1.bf16.msra.mxu0 %v344
    %410 = vmatprep.mubr.bf16.mxu0 %v173
    %411 = vmatmul.mubr.bf16.gmra.mrb[0].mxu0 %v172
    %v412 = vpop.f32.mrb[0].mxu0
    %v413 = vadd.f32 %v211, %v412
    %v414 = vpop.f32.mrb[0].mxu0
    %v415 = vadd.f32 %v215, %v414
    %v416 = vpop.f32.mrb[0].mxu0
    %v417 = vadd.f32 %v211, %v416
    %v418 = vpop.f32.mrb[0].mxu0
    %v419 = vadd.f32 %v215, %v418
    %420 = vdwg.mxu0
    %v421 = vmax.f32 %v413, 0.0
    %v422 = vmax.f32 %v415, 0.0
    %v423 = vmax.f32 %v417, 0.0
    %v424 = vmax.f32 %v419, 0.0
    %v425 = vpack.c.bf16 %v423, %v421
    %v426 = vpack.c.bf16 %v424, %v422
    %v427 = vld [vmem:[#allocation7] sm:$0xf]
    %v428 = vld [vmem:[#allocation7 + $0x4] sm:$0xf]
    %v429 = vld [vmem:[#allocation7 + $0x8] sm:$0xf]
    %v430 = vld [vmem:[#allocation7 + $0xc] sm:$0xf]
    %v431 = vld [vmem:[#allocation7 + $0x10] sm:$0xf]
    %v432 = vld [vmem:[#allocation7 + $0x14] sm:$0xf]
    %v433 = vld [vmem:[#allocation7 + $0x18] sm:$0xf]
    %v434 = vld [vmem:[#allocation7 + $0x1c] sm:$0xf]
    %v435 = vld [vmem:[#allocation7 + $0x20] sm:$0xf]
    %v436 = vld [vmem:[#allocation7 + $0x24] sm:$0xf]
    %v437 = vld [vmem:[#allocation7 + $0x28] sm:$0xf]
    %v438 = vld [vmem:[#allocation7 + $0x2c] sm:$0xf]
    %v439 = vld [vmem:[#allocation7 + $0x30] sm:$0xf]
    %v440 = vld [vmem:[#allocation7 + $0x34] sm:$0xf]
    %v441 = vld [vmem:[#allocation7 + $0x38] sm:$0xf]
    %v442 = vld [vmem:[#allocation7 + $0x3c] sm:$0xf]
    %v443 = vld [vmem:[#allocation7 + $0x40] sm:$0xf]
    %v444 = vld [vmem:[#allocation7 + $0x44] sm:$0xf]
    %v445 = vld [vmem:[#allocation7 + $0x48] sm:$0xf]
    %v446 = vld [vmem:[#allocation7 + $0x4c] sm:$0xf]
    %v447 = vld [vmem:[#allocation7 + $0x50] sm:$0xf]
    %v448 = vld [vmem:[#allocation7 + $0x54] sm:$0xf]
    %v449 = vld [vmem:[#allocation7 + $0x58] sm:$0xf]
    %v450 = vld [vmem:[#allocation7 + $0x5c] sm:$0xf]
    %v451 = vld [vmem:[#allocation7 + $0x60] sm:$0xf]
    %v452 = vld [vmem:[#allocation7 + $0x64] sm:$0xf]
    %v453 = vld [vmem:[#allocation7 + $0x68] sm:$0xf]
    %v454 = vld [vmem:[#allocation7 + $0x6c] sm:$0xf]
    %v455 = vld [vmem:[#allocation7 + $0x70] sm:$0xf]
    %v456 = vld [vmem:[#allocation7 + $0x74] sm:$0xf]
    %v457 = vld [vmem:[#allocation7 + $0x78] sm:$0xf]
    %v458 = vld [vmem:[#allocation7 + $0x7c] sm:$0xf]
    %v459 = vld [vmem:[%s6] sm:$0x1]
    %v461 = vlaneseq
    %v462 = vshrl.u32 %v461, 7
    %v463 = vsub.s32 0, %v462
    %v464 = vrot.slane %v459, %v463
    %v498 = vunpack.c.l.b16 %v427
    %v499 = vunpack.c.l.b16 %v428
    %v500 = vunpack.c.l.b16 %v429
    %v501 = vunpack.c.l.b16 %v430
    %v502 = vunpack.c.l.b16 %v431
    %v503 = vunpack.c.l.b16 %v432
    %v504 = vunpack.c.l.b16 %v433
    %v505 = vunpack.c.l.b16 %v434
    %v506 = vunpack.c.l.b16 %v435
    %v507 = vunpack.c.l.b16 %v436
    %v508 = vunpack.c.l.b16 %v437
    %v509 = vunpack.c.l.b16 %v438
    %v510 = vunpack.c.l.b16 %v439
    %v511 = vunpack.c.l.b16 %v440
    %v512 = vunpack.c.l.b16 %v441
    %v513 = vunpack.c.l.b16 %v442
    %v514 = vunpack.c.l.b16 %v443
    %v515 = vunpack.c.l.b16 %v444
    %v516 = vunpack.c.l.b16 %v445
    %v517 = vunpack.c.l.b16 %v446
    %v518 = vunpack.c.l.b16 %v447
    %v519 = vunpack.c.l.b16 %v448
    %v520 = vunpack.c.l.b16 %v449
    %v521 = vunpack.c.l.b16 %v450
    %v522 = vunpack.c.l.b16 %v451
    %v523 = vunpack.c.l.b16 %v452
    %v524 = vunpack.c.l.b16 %v453
    %v525 = vunpack.c.l.b16 %v454
    %v526 = vunpack.c.l.b16 %v455
    %v527 = vunpack.c.l.b16 %v456
    %v528 = vunpack.c.l.b16 %v457
    %v529 = vunpack.c.l.b16 %v458
    %v530 = vpack.c.b16 %v499, %v498
    %v531 = vpack.c.b16 %v501, %v500
    %v532 = vpack.c.b16 %v503, %v502
    %v533 = vpack.c.b16 %v505, %v504
    %v534 = vpack.c.b16 %v507, %v506
    %v535 = vpack.c.b16 %v509, %v508
    %v536 = vpack.c.b16 %v511, %v510
    %v537 = vpack.c.b16 %v513, %v512
    %v538 = vpack.c.b16 %v515, %v514
    %v539 = vpack.c.b16 %v517, %v516
    %v540 = vpack.c.b16 %v519, %v518
    %v541 = vpack.c.b16 %v521, %v520
    %v542 = vpack.c.b16 %v523, %v522
    %v543 = vpack.c.b16 %v525, %v524
    %v544 = vpack.c.b16 %v527, %v526
    %v545 = vpack.c.b16 %v529, %v528
    %562 = vmatprep.subr.bf16.mxu0 0
    %563 = vmatpush1.bf16.msra.mxu0 %v530
    %564 = vmatprep.subr.bf16.mxu0 0
    %565 = vmatpush1.bf16.msra.mxu0 %v531
    %566 = vmatprep.subr.bf16.mxu0 0
    %567 = vmatpush1.bf16.msra.mxu0 %v532
    %568 = vmatprep.subr.bf16.mxu0 0
    %569 = vmatpush1.bf16.msra.mxu0 %v533
    %570 = vmatprep.subr.bf16.mxu0 0
    %571 = vmatpush1.bf16.msra.mxu0 %v534
    %572 = vmatprep.subr.bf16.mxu0 0
    %573 = vmatpush1.bf16.msra.mxu0 %v535
    %574 = vmatprep.subr.bf16.mxu0 0
    %575 = vmatpush1.bf16.msra.mxu0 %v536
    %576 = vmatprep.subr.bf16.mxu0 0
    %577 = vmatpush1.bf16.msra.mxu0 %v537
    %578 = vmatprep.subr.bf16.mxu0 0
    %579 = vmatpush1.bf16.msra.mxu0 %v538
    %580 = vmatprep.subr.bf16.mxu0 0
    %581 = vmatpush1.bf16.msra.mxu0 %v539
    %582 = vmatprep.subr.bf16.mxu0 0
    %583 = vmatpush1.bf16.msra.mxu0 %v540
    %584 = vmatprep.subr.bf16.mxu0 0
    %585 = vmatpush1.bf16.msra.mxu0 %v541
    %586 = vmatprep.subr.bf16.mxu0 0
    %587 = vmatpush1.bf16.msra.mxu0 %v542
    %588 = vmatprep.subr.bf16.mxu0 0
    %589 = vmatpush1.bf16.msra.mxu0 %v543
    %590 = vmatprep.subr.bf16.mxu0 0
    %591 = vmatpush1.bf16.msra.mxu0 %v544
    %592 = vmatprep.subr.bf16.mxu0 0
    %593 = vmatpush1.bf16.msra.mxu0 %v545
    %594 = vmatprep.mubr.bf16.mxu0 %v426
    %595 = vmatmul.mubr.bf16.gmra.mrb[0].mxu0 %v425
    %v596 = vpop.f32.mrb[0].mxu0
    %v597 = vadd.f32 %v464, %v596
    %v598 = vpop.f32.mrb[0].mxu0
    %v599 = vpop.f32.mrb[0].mxu0
    %v600 = vadd.f32 %v464, %v599
    %v601 = vpop.f32.mrb[0].mxu0
    %602 = vdwg.mxu0
    %v603 = vtanh.pop %v597
    %v604 = vtanh.pop %v600
    %v605 = vmul.f32 %v603, 2.0
    %v606 = vmul.f32 %v604, 2.0
    %v607 = vpack.c.bf16 %v606, %v605
    %v609 = vcombine.high %v607, %v607
    %v611 = vunpack.c.l.s4 1966171168
    %v612 = vunpack.c.0.s8 %v611
    %v613 = vlaneseq
    %v614 = vshrl.u32 %v613, 7
    %v615 = vsub.s32 %v612, %v614
    %v616 = vrot.slane %v607, %v615
    %v618 = vunpack.c.l.s4 1966171168
    %v619 = vunpack.c.0.s8 %v618
    %v620 = vlaneseq
    %v621 = vshrl.u32 %v620, 7
    %v622 = vsub.s32 %v619, %v621
    %v623 = vrot.slane %v609, %v622
    %v624 = vcombine.high %v616, %v616
    %v625 = vcombine.high %v623, %v623
    %v627 = vunpack.c.l.s4 1966171168
    %v628 = vunpack.c.0.s8 %v627
    %v629 = vlaneseq
    %v630 = vshrl.u32 %v629, 7
    %v631 = vsub.s32 %v628, %v630
    %v632 = vrot.slane %v616, %v631
    %v634 = vunpack.c.l.s4 1966171168
    %v635 = vunpack.c.0.s8 %v634
    %v636 = vlaneseq
    %v637 = vshrl.u32 %v636, 7
    %v638 = vsub.s32 %v635, %v637
    %v639 = vrot.slane %v623, %v638
    %v641 = vunpack.c.l.s4 1966171168
    %v642 = vunpack.c.0.s8 %v641
    %v643 = vlaneseq
    %v644 = vshrl.u32 %v643, 7
    %v645 = vsub.s32 %v642, %v644
    %v646 = vrot.slane %v624, %v645
    %v648 = vunpack.c.l.s4 1966171168
    %v649 = vunpack.c.0.s8 %v648
    %v650 = vlaneseq
    %v651 = vshrl.u32 %v650, 7
    %v652 = vsub.s32 %v649, %v651
    %v653 = vrot.slane %v625, %v652
    %v654 = vcombine.high %v632, %v632
    %v655 = vcombine.high %v639, %v639
    %v656 = vcombine.high %v646, %v646
    %v657 = vcombine.high %v653, %v653
    %666 = vst [vmem:[#allocation9] sm:$0x1] %v632
    %667 = vst [vmem:[#allocation9 + $0x1] sm:$0x1] %v646
    %668 = vst [vmem:[#allocation9 + $0x2] sm:$0x1] %v654
    %669 = vst [vmem:[#allocation9 + $0x3] sm:$0x1] %v656
    %670 = vst [vmem:[#allocation9 + $0x4] sm:$0x1] %v639
    %671 = vst [vmem:[#allocation9 + $0x5] sm:$0x1] %v653
    %672 = vst [vmem:[#allocation9 + $0x6] sm:$0x1] %v655
    %673 = vst [vmem:[#allocation9 + $0x7] sm:$0x1] %v657
    // Predicated region
    $region46: #{_actor_forward_jit.1} parent=1 // pred_check
      _
    $region47: #{_actor_forward_jit.1} parent=1 // pred_check_branch
      %675 = sbr.rel (0) target = $region49
    $region48: #{_actor_forward_jit.1} parent=1 // pred_region
      // Predicated region
      $region50: #{_actor_forward_jit.1} parent=48 // pred_check
        _
      $region51: #{_actor_forward_jit.1} parent=48 // pred_check_branch
        %677 = sbr.rel (0) target = $region53
      $region52: #{_actor_forward_jit.1} parent=48 // pred_region
        // Predicated region
        $region54: #{_actor_forward_jit.1} parent=52 // pred_check
          _
        $region55: #{_actor_forward_jit.1} parent=52 // pred_check_branch
          %679 = sbr.rel target = $region57
        $region56: #{_actor_forward_jit.1} parent=52 // pred_region
          // Predicated region
          $region69: #{_actor_forward_jit.1} parent=56 // pred_check
            _
          $region70: #{_actor_forward_jit.1} parent=56 // pred_check_branch
            %694 = sbr.rel (0) target = $region72
          $region71: #{_actor_forward_jit.1} parent=56 // pred_region
            loop: start=0, step=1, limit=1
            $region73: #{_actor_forward_jit.1} parent=71 // loop_pre_header
              _
            $region74: #{_actor_forward_jit.1} parent=71 // loop_header
              %s697 = sphi 0, %s701
              %p698 = scmp.ge.s32.totalorder %s697, 1
              %s702 = sphi [#allocation9], [#allocation9]
              %s703 = sphi %s7, %s7
            $region75: #{_actor_forward_jit.1} parent=71 // loop_header_branch
              %700 = sbr.rel (%p698) target = $region79
            $region76: #{_actor_forward_jit.1} parent=71 // loop_body
              %v704 = vld [vmem:[%s702] sm:$0x1]
              %705 = vst [vmem:[%s703] sm:$0x1] %v704
            $region77: #{_actor_forward_jit.1} parent=71 // loop_footer
              %s701 = sadd.s32 1, %s697
            $region78: #{_actor_forward_jit.1} parent=71 // loop_footer_branch
              %696 = sbr.rel target = $region74
            $region79: #{_actor_forward_jit.1} parent=71 // loop_exit
              _
          $region72: #{_actor_forward_jit.1} parent=56 // pred_fallthru
            _
        $region57: #{_actor_forward_jit.1} parent=52 // pred_fallthru
          _
        // Predicated region
        $region58: #{_actor_forward_jit.1} parent=52 // pred_check
          _
        $region59: #{_actor_forward_jit.1} parent=52 // pred_check_branch
          %681 = sbr.rel (0) target = $region61
        $region60: #{_actor_forward_jit.1} parent=52 // pred_region
          loop: start=0, step=1, limit=1
          $region62: #{_actor_forward_jit.1} parent=60 // loop_pre_header
            _
          $region63: #{_actor_forward_jit.1} parent=60 // loop_header
            %s684 = sphi 0, %s688
            %p685 = scmp.ge.s32.totalorder %s684, 1
            %s689 = sphi [#allocation9], [#allocation9]
            %s690 = sphi %s7, %s7
          $region64: #{_actor_forward_jit.1} parent=60 // loop_header_branch
            %687 = sbr.rel (%p685) target = $region68
          $region65: #{_actor_forward_jit.1} parent=60 // loop_body
            %v691 = vld [vmem:[%s689] sm:$0x1]
            %692 = vst [vmem:[%s690] sm:$0x1] %v691
          $region66: #{_actor_forward_jit.1} parent=60 // loop_footer
            %s688 = sadd.s32 1, %s684
          $region67: #{_actor_forward_jit.1} parent=60 // loop_footer_branch
            %683 = sbr.rel target = $region63
          $region68: #{_actor_forward_jit.1} parent=60 // loop_exit
            _
        $region61: #{_actor_forward_jit.1} parent=52 // pred_fallthru
          _
      $region53: #{_actor_forward_jit.1} parent=48 // pred_fallthru
        _
      %706 = vnop
    $region49: #{_actor_forward_jit.1} parent=1 // pred_fallthru
      _
    // Predicated region
    $region80: #{_actor_forward_jit.1} parent=1 // pred_check
      _
    $region81: #{_actor_forward_jit.1} parent=1 // pred_check_branch
      %708 = sbr.rel (0) target = $region83
    $region82: #{_actor_forward_jit.1} parent=1 // pred_region
      _
    $region83: #{_actor_forward_jit.1} parent=1 // pred_fallthru
      _
    %709 = vsyncpa [#allocation3], 1
    %710 = vsyncpa [#allocation5], 1
    %711 = vsyncpa [#allocation8], 1

</llo_original>
